<compile_context>
chip_gen: v6e
topology: v6e:2x2x1
jax: 0.10.0
libtpu: 0.0.40
codegen_flags: <defaults>
</compile_context>

<pallas_src>
import functools

import jax
import jax.numpy as jnp
from jax import lax
from jax.experimental import pallas as pl
from jax.experimental.pallas import tpu as pltpu

LANES = 128              # vreg lane width (last dim)
SUBLANES = 8             # sublane granularity (second-to-last dim)
MAX_ROWS_PER_TILE = 2048 # 2048*128 atoms/step: 1 MiB in + 1 MiB out, ~4 MiB double-buffered
MIN_GRID_STEPS = 8       # keep >=8 grid steps when there is enough data (v7x dual-TC + pipelining)
SELECT_MAX_TYPES = 16    # compare-select chain only for tiny tables; gather otherwise


def _round_up(x: int, m: int) -> int:
    return ((x + m - 1) // m) * m


def _pick_rows_tile(rows: int) -> int:
    if rows <= SUBLANES:
        return rows  # block equal to full extent (exempt from the 8-row rule)
    tile = _round_up(max(SUBLANES, rows // MIN_GRID_STEPS), SUBLANES)
    return min(MAX_ROWS_PER_TILE, tile)


# ----------------------------------------------------------------------------
# Kernels
# ----------------------------------------------------------------------------
def _atom_ref_select_kernel(table_ref, types_ref, out_ref, *, num_types: int):
    """Tiny-table path: SMEM scalar table, VPU compare-select gather."""
    # table_ref: (num_types,) f32 in SMEM (scalar-prefetched, resident)
    # types_ref: (rows_tile, 128) int32, out_ref: (rows_tile, 128) f32
    t = types_ref[...]
    acc = jnp.zeros(t.shape, dtype=jnp.float32)
    if num_types <= 32:
        # Fully unrolled: best LLO scheduling for tiny tables.
        for type_id in range(num_types):
            acc = jnp.where(t == type_id, table_ref[type_id], acc)
    else:
        # Bounded compile time for large tables (only used as a fallback path).
        def body(i, a):
            return jnp.where(t == i, table_ref[i], a)
        acc = lax.fori_loop(0, num_types, body, acc)
    out_ref[...] = acc


def _atom_ref_gather_kernel(types_ref, table_ref, out_ref, *, num_chunks: int):
    """Large-table path: lane gather against a 128-lane VMEM table chunk."""
    # types_ref: (rows_tile, 128) int32
    # table_ref: (num_chunks, 128) f32 VMEM (table padded to 128-lane chunks)
    # out_ref:   (rows_tile, 128) f32
    t = types_ref[...]
    out = jnp.zeros(t.shape, dtype=jnp.float32)
    for c in range(num_chunks):  # num_chunks is tiny (1 for a full periodic table)
        local = t - c * LANES
        idx = jnp.clip(local, 0, LANES - 1)                       # keep gather in-lane-range
        row = jnp.broadcast_to(table_ref[c:c + 1, :], t.shape)    # sublane-broadcast chunk
        g = jnp.take_along_axis(row, idx, axis=-1)                # tpu.dynamic_gather (XLU)
        out = jnp.where((local >= 0) & (local < LANES), g, out)
    out_ref[...] = out


# ----------------------------------------------------------------------------
# pallas_call wrappers
# ----------------------------------------------------------------------------
def _call_select(types_2d, table_f32, rows, rows_tile, num_tiles, num_types):
    return pl.pallas_call(
        functools.partial(_atom_ref_select_kernel, num_types=num_types),
        out_shape=jax.ShapeDtypeStruct((rows, LANES), jnp.float32),
        grid_spec=pltpu.PrefetchScalarGridSpec(
            num_scalar_prefetch=1,  # elemental-energy table -> SMEM
            grid=(num_tiles,),
            in_specs=[pl.BlockSpec((rows_tile, LANES), lambda i, tab: (i, 0))],
            out_specs=pl.BlockSpec((rows_tile, LANES), lambda i, tab: (i, 0)),
        ),
        compiler_params=pltpu.CompilerParams(dimension_semantics=("parallel",)),
    )(table_f32, types_2d)


def _call_gather(types_2d, table_f32, rows, rows_tile, num_tiles, num_types):
    num_chunks = pl.cdiv(num_types, LANES)
    table_pad = num_chunks * LANES
    table_2d = jnp.pad(table_f32, (0, table_pad - num_types)).reshape(num_chunks, LANES)
    return pl.pallas_call(
        functools.partial(_atom_ref_gather_kernel, num_chunks=num_chunks),
        out_shape=jax.ShapeDtypeStruct((rows, LANES), jnp.float32),
        grid=(num_tiles,),
        in_specs=[
            pl.BlockSpec((rows_tile, LANES), lambda i: (i, 0)),      # atom types
            pl.BlockSpec((num_chunks, LANES), lambda i: (0, 0)),     # energy table (resident)
        ],
        out_specs=pl.BlockSpec((rows_tile, LANES), lambda i: (i, 0)),
        compiler_params=pltpu.CompilerParams(dimension_semantics=("parallel",)),
    )(types_2d, table_2d)


@functools.lru_cache(maxsize=None)
def _dynamic_gather_supported() -> bool:
    """One-time probe: does jnp.take_along_axis lower to tpu.dynamic_gather here?"""
    try:
        tab = jnp.arange(LANES, dtype=jnp.float32)
        t = jnp.full((SUBLANES, LANES), 5, dtype=jnp.int32)
        out = _call_gather(t, tab, SUBLANES, SUBLANES, 1, LANES)
        jax.block_until_ready(out)
        return bool(jnp.all(out == 5.0))
    except Exception:  # lowering unavailable on this jax/libtpu -> compare-select fallback
        return False


# ----------------------------------------------------------------------------
# Public API
# ----------------------------------------------------------------------------
def atom_ref_forward_packed(types_2d: jax.Array, elemental_energies: jax.Array) -> jax.Array:
    """Gather on a packed (rows, 128) atom-type slab; returns a (rows, 128) f32 slab.

    Zero wrapper-side HBM traffic: no pad, no slice, no relayout.
    """
    rows, lanes = types_2d.shape
    if lanes != LANES:
        raise ValueError(f"packed slab must have {LANES} lanes, got {lanes}")
    if types_2d.dtype != jnp.int32:
        types_2d = types_2d.astype(jnp.int32)
    table = elemental_energies
    if table.dtype != jnp.float32:
        table = table.astype(jnp.float32)
    num_types = table.shape[0]

    rows_tile = _pick_rows_tile(rows)
    num_tiles = pl.cdiv(rows, rows_tile)  # ragged last block is masked by Pallas

    if num_types > SELECT_MAX_TYPES and _dynamic_gather_supported():
        return _call_gather(types_2d, table, rows, rows_tile, num_tiles, num_types)
    return _call_select(types_2d, table, rows, rows_tile, num_tiles, num_types)


def atom_ref_forward(atom_types: jax.Array, elemental_energies: jax.Array) -> jax.Array:
    """energies = elemental_energies[atom_types]  (1-D convenience wrapper)."""
    num_atoms = atom_types.shape[0]
    if atom_types.dtype != jnp.int32:
        atom_types = atom_types.astype(jnp.int32)

    rows = pl.cdiv(num_atoms, LANES)
    pad = rows * LANES - num_atoms
    flat = jnp.pad(atom_types, (0, pad)) if pad else atom_types   # no copy when already aligned
    out_2d = atom_ref_forward_packed(flat.reshape(rows, LANES), elemental_energies)
    return out_2d.reshape(-1)[:num_atoms]


# ----------------------------------------------------------------------------
# Demo / self-check
# ----------------------------------------------------------------------------
if __name__ == "__main__":
    key = jax.random.PRNGKey(0)
    k1, k2, k3, k4 = jax.random.split(key, 4)

    # Case 1: tiny element table -> SMEM compare-select path (module's small scale).
    num_types = 8
    num_atoms = 20
    elemental_energies = jax.random.normal(k1, (num_types,), dtype=jnp.float32)
    atom_types = jax.random.randint(k2, (num_atoms,), 0, num_types, dtype=jnp.int32)

    energies = atom_ref_forward(atom_types, elemental_energies)
    jax.block_until_ready(energies)
    ref = elemental_energies[atom_types]
    assert energies.shape == (num_atoms,)
    assert energies.dtype == jnp.float32
    assert jnp.allclose(energies, ref, atol=1e-6), (energies, ref)

    # Case 2: periodic-table-sized element table -> VMEM lane-gather path,
    # multi-step grid with a ragged last block (1280 atoms = 10 rows, tile = 8 rows).
    num_types2 = 89
    num_atoms2 = 1280
    elemental_energies2 = jax.random.normal(k3, (num_types2,), dtype=jnp.float32)
    atom_types2 = jax.random.randint(k4, (num_atoms2,), 0, num_types2, dtype=jnp.int32)

    energies2 = atom_ref_forward(atom_types2, elemental_energies2)
    jax.block_until_ready(energies2)
    ref2 = elemental_energies2[atom_types2]
    assert energies2.shape == (num_atoms2,)
    assert jnp.allclose(energies2, ref2, atol=1e-6)

    print("KERNEL_OK")
</pallas_src>

<mosaic_0001>
module attributes {stable_mosaic.version = 11 : i64} {
  func.func @_atom_ref_select_kernel(%arg0: i32, %arg1: memref<8xf32, #tpu.memory_space<smem>>, %arg2: memref<1x128xi32, #tpu.memory_space<vmem>>, %arg3: memref<1x128xf32, #tpu.memory_space<vmem>>) attributes {dimension_semantics = [#tpu.dimension_semantics<parallel>], iteration_bounds = array<i64: 1>, scalar_prefetch = 1 : i64, scratch_operands = 0 : i64, tpu.core_type = #tpu.core_type<tc>, window_params = [{transform_indices = @transform_0, window_bounds = array<i64: 1, 128>}, {transform_indices = @transform_1, window_bounds = array<i64: 1, 128>}]} {
    %c0 = arith.constant 0 : index
    %c0_0 = arith.constant 0 : index
    %0 = vector.load %arg2[%c0, %c0_0] : memref<1x128xi32, #tpu.memory_space<vmem>>, vector<1x128xi32>
    %cst = arith.constant 0.000000e+00 : f32
    %1 = vector.broadcast %cst : f32 to vector<1x128xf32>
    %c0_i32 = arith.constant 0 : i32
    %2 = vector.broadcast %c0_i32 : i32 to vector<1x128xi32>
    %3 = arith.cmpi eq, %0, %2 : vector<1x128xi32>
    %c0_1 = arith.constant 0 : index
    %4 = memref.load %arg1[%c0_1] : memref<8xf32, #tpu.memory_space<smem>>
    %5 = vector.broadcast %4 : f32 to vector<1x128xf32>
    %6 = arith.select %3, %5, %1 : vector<1x128xi1>, vector<1x128xf32>
    %c1_i32 = arith.constant 1 : i32
    %7 = vector.broadcast %c1_i32 : i32 to vector<1x128xi32>
    %8 = arith.cmpi eq, %0, %7 : vector<1x128xi32>
    %c1 = arith.constant 1 : index
    %9 = memref.load %arg1[%c1] : memref<8xf32, #tpu.memory_space<smem>>
    %10 = vector.broadcast %9 : f32 to vector<1x128xf32>
    %11 = arith.select %8, %10, %6 : vector<1x128xi1>, vector<1x128xf32>
    %c2_i32 = arith.constant 2 : i32
    %12 = vector.broadcast %c2_i32 : i32 to vector<1x128xi32>
    %13 = arith.cmpi eq, %0, %12 : vector<1x128xi32>
    %c2 = arith.constant 2 : index
    %14 = memref.load %arg1[%c2] : memref<8xf32, #tpu.memory_space<smem>>
    %15 = vector.broadcast %14 : f32 to vector<1x128xf32>
    %16 = arith.select %13, %15, %11 : vector<1x128xi1>, vector<1x128xf32>
    %c3_i32 = arith.constant 3 : i32
    %17 = vector.broadcast %c3_i32 : i32 to vector<1x128xi32>
    %18 = arith.cmpi eq, %0, %17 : vector<1x128xi32>
    %c3 = arith.constant 3 : index
    %19 = memref.load %arg1[%c3] : memref<8xf32, #tpu.memory_space<smem>>
    %20 = vector.broadcast %19 : f32 to vector<1x128xf32>
    %21 = arith.select %18, %20, %16 : vector<1x128xi1>, vector<1x128xf32>
    %c4_i32 = arith.constant 4 : i32
    %22 = vector.broadcast %c4_i32 : i32 to vector<1x128xi32>
    %23 = arith.cmpi eq, %0, %22 : vector<1x128xi32>
    %c4 = arith.constant 4 : index
    %24 = memref.load %arg1[%c4] : memref<8xf32, #tpu.memory_space<smem>>
    %25 = vector.broadcast %24 : f32 to vector<1x128xf32>
    %26 = arith.select %23, %25, %21 : vector<1x128xi1>, vector<1x128xf32>
    %c5_i32 = arith.constant 5 : i32
    %27 = vector.broadcast %c5_i32 : i32 to vector<1x128xi32>
    %28 = arith.cmpi eq, %0, %27 : vector<1x128xi32>
    %c5 = arith.constant 5 : index
    %29 = memref.load %arg1[%c5] : memref<8xf32, #tpu.memory_space<smem>>
    %30 = vector.broadcast %29 : f32 to vector<1x128xf32>
    %31 = arith.select %28, %30, %26 : vector<1x128xi1>, vector<1x128xf32>
    %c6_i32 = arith.constant 6 : i32
    %32 = vector.broadcast %c6_i32 : i32 to vector<1x128xi32>
    %33 = arith.cmpi eq, %0, %32 : vector<1x128xi32>
    %c6 = arith.constant 6 : index
    %34 = memref.load %arg1[%c6] : memref<8xf32, #tpu.memory_space<smem>>
    %35 = vector.broadcast %34 : f32 to vector<1x128xf32>
    %36 = arith.select %33, %35, %31 : vector<1x128xi1>, vector<1x128xf32>
    %c7_i32 = arith.constant 7 : i32
    %37 = vector.broadcast %c7_i32 : i32 to vector<1x128xi32>
    %38 = arith.cmpi eq, %0, %37 : vector<1x128xi32>
    %c7 = arith.constant 7 : index
    %39 = memref.load %arg1[%c7] : memref<8xf32, #tpu.memory_space<smem>>
    %40 = vector.broadcast %39 : f32 to vector<1x128xf32>
    %41 = arith.select %38, %40, %36 : vector<1x128xi1>, vector<1x128xf32>
    %c0_2 = arith.constant 0 : index
    %c0_3 = arith.constant 0 : index
    %42 = vector.load %arg3[%c0_2, %c0_3] : memref<1x128xf32, #tpu.memory_space<vmem>>, vector<1x128xf32>
    tpu.vector_store %arg3[%c0_2, %c0_3], %41 {strides = array<i32>} : memref<1x128xf32, #tpu.memory_space<vmem>>, vector<1x128xf32>,
    return
  }
  func.func @transform_0(%arg0: i32, %arg1: memref<8xf32, #tpu.memory_space<smem>>) -> (i32, i32) {
    %c0_i32 = arith.constant 0 : i32
    %c0_i32_0 = arith.constant 0 : i32
    return %arg0, %c0_i32 : i32, i32
  }
  func.func @transform_1(%arg0: i32, %arg1: memref<8xf32, #tpu.memory_space<smem>>) -> (i32, i32) {
    %c0_i32 = arith.constant 0 : i32
    %c0_i32_0 = arith.constant 0 : i32
    return %arg0, %c0_i32 : i32, i32
  }
}

</mosaic_0001>

<llo_original>
// kernel: tpu_custom_call.1
$region0: #{tpu_custom_call.1}
  #allocation0 [shape = 'u32[]', space=smem, size = 0x4, offset = 0x4, fixed_abs, tag = 'smem constant byte address 0x4 - core index']
  #allocation1 [shape = 'u32[144,128]{1,0:T(1,128)}', space=vmem, size = 0x12000, scoped, tag = 'internal scratch']
  #allocation2 [shape = 's32[1]{0}', space=sflag, size = 0x4, scoped, tag = 'scoped memory for tpu_custom_call.1']
  #allocation3 [shape = 'u8[512]{0}', space=smem, size = 0x200, scoped, tag = 'prefetched SMEM operand 0']
  %s0 = inlined_call_operand.hbm [shape: f32[8], index: 0, kind: input, shape index: {}]
  %s1 = inlined_call_operand.vmem [shape: s32[1,128], index: 1, kind: input, shape index: {}]
  %s2 = inlined_call_operand.hbm [shape: f32[1,128], index: 2, kind: output, shape index: {}]
  %s3 = sld [smem:[#allocation0]]
  $region14: #{tpu_custom_call.1} parent=0
    _
  %s5 = ssub.s32 1, %s3
  %s6 = scalar_select 0, %s5, %s3
  %8 = dma.hbm_to_smem %s0, 16, [#allocation3], [#allocation2]
  %9 = dma.done [#allocation2], 16
  %10 = sfence
  $region1: #{tpu_custom_call.1} parent=0
    #allocation4 [shape = 'u8[512]{0}', space=vmem, size = 0x400, scoped, tag = 'output window, operand 0, single buffered']
    #allocation5 [shape = 's32[1]{0}', space=sflag, size = 0x4, scoped, tag = 'scoped memory for tpu_custom_call.1']
    %11 = vsyncpa [#allocation5], 0
    // Predicated region
    $region2: #{tpu_custom_call.1} parent=1 // pred_check
      _
    $region3: #{tpu_custom_call.1} parent=1 // pred_check_branch
      %13 = sbr.rel (0) target = $region5
    $region4: #{tpu_custom_call.1} parent=1 // pred_region
      _
    $region5: #{tpu_custom_call.1} parent=1 // pred_fallthru
      _
    %v14 = vld [vmem:[%s1] sm:$0x1]
    %vm15 = vcmp.eq.s32.totalorder %v14, 0
    %s16 = sld [smem:[#allocation3]]
    %v17 = vstv %s16
    %v18 = vsel %vm15, %v17, 0.0
    %vm19 = vcmp.eq.s32.totalorder %v14, 1
    %s20 = sld [smem:[#allocation3 + $0x1]]
    %v21 = vstv %s20
    %v22 = vsel %vm19, %v21, %v18
    %vm23 = vcmp.eq.s32.totalorder %v14, 2
    %s24 = sld [smem:[#allocation3 + $0x2]]
    %v25 = vstv %s24
    %v26 = vsel %vm23, %v25, %v22
    %vm27 = vcmp.eq.s32.totalorder %v14, 3
    %s28 = sld [smem:[#allocation3 + $0x3]]
    %v29 = vstv %s28
    %v30 = vsel %vm27, %v29, %v26
    %vm31 = vcmp.eq.s32.totalorder %v14, 4
    %s32 = sld [smem:[#allocation3 + $0x4]]
    %v33 = vstv %s32
    %v34 = vsel %vm31, %v33, %v30
    %vm35 = vcmp.eq.s32.totalorder %v14, 5
    %s36 = sld [smem:[#allocation3 + $0x5]]
    %v37 = vstv %s36
    %v38 = vsel %vm35, %v37, %v34
    %vm39 = vcmp.eq.s32.totalorder %v14, 6
    %s40 = sld [smem:[#allocation3 + $0x6]]
    %v41 = vstv %s40
    %v42 = vsel %vm39, %v41, %v38
    %vm43 = vcmp.eq.s32.totalorder %v14, 7
    %s44 = sld [smem:[#allocation3 + $0x7]]
    %v45 = vstv %s44
    %v46 = vsel %vm43, %v45, %v42
    %47 = vst [vmem:[#allocation4] sm:$0x1] %v46
    // Predicated region
    $region6: #{tpu_custom_call.1} parent=1 // pred_check
      _
    $region7: #{tpu_custom_call.1} parent=1 // pred_check_branch
      %49 = sbr.rel (0) target = $region9
    $region8: #{tpu_custom_call.1} parent=1 // pred_region
      %s51 = ssub.s32 16, 16
      %52 = vsyncadd [#allocation5], %s51
      %s54 = sshll.u32 [#allocation4], 4
      %s55 = int_to_ptr.vmem [resolvable:$true] %s54
      %57 = dma.vmem_to_hbm [thread:$0]  %s55, 16, %s2, [#allocation5]
    $region9: #{tpu_custom_call.1} parent=1 // pred_fallthru
      _
    // Predicated region
    $region10: #{tpu_custom_call.1} parent=1 // pred_check
      _
    $region11: #{tpu_custom_call.1} parent=1 // pred_check_branch
      %59 = sbr.rel (0) target = $region13
    $region12: #{tpu_custom_call.1} parent=1 // pred_region
      %60 = dma.done [#allocation5], 16
    $region13: #{tpu_custom_call.1} parent=1 // pred_fallthru
      _
    %61 = vsyncpa [#allocation5], 1

</llo_original>
